<compile_context>
chip_gen: v7x
topology: tpu7x:2x2x1
jax: 0.10.0
libtpu: 0.0.40
codegen_flags: <defaults>
</compile_context>

<pallas_src>
import functools

import jax
import jax.numpy as jnp
from jax.experimental import pallas as pl
from jax.experimental.pallas import tpu as pltpu


def _identity_kernel(x_ref, o_ref):
    # Hot path: whole-tile pass-through (identity forward).
    o_ref[...] = x_ref[...]


def _round_up(n, m):
    return ((n + m - 1) // m) * m


def _choose_tiling(total, itemsize):
    """Pick (lane_width L, padded rows, row tile tr, pad_elems).

    Targets ~2 MiB blocks so 4 in-flight buffers (double-buffered in + out)
    stay under ~8 MiB — safe for v5e's 16 MiB scoped-VMEM default and v7x's
    64 MiB physical VMEM.
    """
    target_block_bytes = 2 * 1024 * 1024

    # Prefer a lane width and row tile that divide exactly (no padding copy).
    for L in (4096, 2048, 1024, 512, 256, 128):
        if total % L == 0:
            rows = total // L
            if rows % 8 == 0:
                tr_cap = max(8, (target_block_bytes // (L * itemsize)) // 8 * 8)
                tr = min(tr_cap, rows)
                while rows % tr != 0:
                    tr -= 8  # terminates: rows % 8 == 0, so tr == 8 always divides
                return L, rows, tr, 0

    # Fallback: pad up to a clean (rows, L) tiling, slice after the kernel.
    L = 1024 if total >= 1024 else 128
    tr_cap = max(8, (target_block_bytes // (L * itemsize)) // 8 * 8)
    rows0 = -(-total // L)
    tr = min(tr_cap, _round_up(rows0, 8))
    rows = _round_up(rows0, tr)
    pad = rows * L - total
    return L, rows, tr, pad


def mymodel_forward(x, num_classes=None, *, min_kernel_bytes=1 << 20):
    """Pallas implementation of MyModel.forward (identity).

    num_classes is accepted for signature parity with the PyTorch module's
    constructor but does not affect the forward pass.
    """
    orig_shape = x.shape
    orig_dtype = x.dtype
    total = x.size
    itemsize = jnp.dtype(orig_dtype).itemsize

    # Identity: below the dispatch threshold the kernel is pure overhead.
    if total == 0 or total * itemsize < min_kernel_bytes:
        return x

    L, rows, tr, pad = _choose_tiling(total, itemsize)

    flat = x.reshape(-1)
    if pad:
        flat = jnp.pad(flat, (0, pad))
    x2d = flat.reshape(rows, L)

    grid = (rows // tr,)

    out2d = pl.pallas_call(
        _identity_kernel,
        out_shape=jax.ShapeDtypeStruct((rows, L), orig_dtype),
        grid_spec=pltpu.PrefetchScalarGridSpec(
            num_scalar_prefetch=0,
            grid=grid,
            in_specs=[pl.BlockSpec((tr, L), lambda i: (i, 0))],
            out_specs=pl.BlockSpec((tr, L), lambda i: (i, 0)),
        ),
        compiler_params=pltpu.CompilerParams(
            dimension_semantics=("parallel",),
        ),
        # Identity copy: let XLA alias the (donatable, intermediate) input buffer
        # to the output instead of allocating and filling a second HBM slab.
        input_output_aliases={0: 0},
    )(x2d)

    out_flat = out2d.reshape(-1)
    if pad:
        out_flat = out_flat[:total]
    return out_flat.reshape(orig_shape)


if __name__ == "__main__":
    # TODO(synk): the reference module defines no layers/parameters; forward is
    # identity, so there are no weights to initialize.
    key = jax.random.PRNGKey(0)
    x = jax.random.normal(key, (2, 4, 16, 16), dtype=jnp.float32)  # NCHW

    num_classes = 10  # constructor parity only; unused by forward

    # Force the kernel path (min_kernel_bytes=0) so the Pallas kernel runs once
    # even at this small demo size; production callers keep the default
    # threshold and get the free pass-through for small tensors.
    fwd = jax.jit(
        functools.partial(mymodel_forward, num_classes=num_classes, min_kernel_bytes=0)
    )
    y = jax.block_until_ready(fwd(x))

    assert y.shape == x.shape
    assert y.dtype == x.dtype
    assert bool(jnp.allclose(y, x)), "identity kernel mismatch"
    print("KERNEL_OK")
</pallas_src>

<mosaic_0001>
module attributes {stable_mosaic.version = 11 : i64} {
  func.func @_identity_kernel(%arg0: i32, %arg1: memref<8x256xf32, #tpu.memory_space<vmem>>, %arg2: memref<8x256xf32, #tpu.memory_space<vmem>>) attributes {dimension_semantics = [#tpu.dimension_semantics<parallel>], iteration_bounds = array<i64: 1>, scalar_prefetch = 0 : i64, scratch_operands = 0 : i64, tpu.core_type = #tpu.core_type<tc>, window_params = [{transform_indices = @transform_0, window_bounds = array<i64: 8, 256>}, {transform_indices = @transform_1, window_bounds = array<i64: 8, 256>}]} {
    %c0 = arith.constant 0 : index
    %c0_0 = arith.constant 0 : index
    %0 = vector.load %arg1[%c0, %c0_0] : memref<8x256xf32, #tpu.memory_space<vmem>>, vector<8x256xf32>
    %c0_1 = arith.constant 0 : index
    %c0_2 = arith.constant 0 : index
    %1 = vector.load %arg2[%c0_1, %c0_2] : memref<8x256xf32, #tpu.memory_space<vmem>>, vector<8x256xf32>
    tpu.vector_store %arg2[%c0_1, %c0_2], %0 {strides = array<i32>} : memref<8x256xf32, #tpu.memory_space<vmem>>, vector<8x256xf32>,
    return
  }
  func.func @transform_0(%arg0: i32) -> (i32, i32) {
    %c0_i32 = arith.constant 0 : i32
    %c0_i32_0 = arith.constant 0 : i32
    return %arg0, %c0_i32 : i32, i32
  }
  func.func @transform_1(%arg0: i32) -> (i32, i32) {
    %c0_i32 = arith.constant 0 : i32
    %c0_i32_0 = arith.constant 0 : i32
    return %arg0, %c0_i32 : i32, i32
  }
}

</mosaic_0001>

<llo_original>
// kernel: mymodel_forward.1
$region0: #{mymodel_forward.1}
  #allocation0 [shape = 'u32[]', space=smem, size = 0x4, offset = 0x4, fixed_abs, tag = 'smem constant byte address 0x4 - core index']
  #allocation1 [shape = 'u32[144,128]{1,0:T(1,128)}', space=vmem, size = 0x12000, scoped, tag = 'internal scratch']
  %s0 = inlined_call_operand.vmem [shape: f32[8,256], index: 0, kind: input, shape index: {}, may-alias: {0,1}]
  %s1 = inlined_call_operand.vmem [shape: f32[8,256], index: 1, kind: output, shape index: {}, may-alias: {0,1}]
  %s2 = sld [smem:[#allocation0]]
  $region14: #{mymodel_forward.1} parent=0
    _
  %s4 = ssub.s32 1, %s2
  %s5 = scalar_select 0, %s4, %s2
  // Predicated region
  $region2: #{mymodel_forward.1} parent=0 // pred_check
    _
  $region3: #{mymodel_forward.1} parent=0 // pred_check_branch
    %7 = sbr.rel (0) target = $region5
  $region4: #{mymodel_forward.1} parent=0 // pred_region
    _
  $region5: #{mymodel_forward.1} parent=0 // pred_fallthru
    _
  %v8 = vld [vmem:[%s0] sm:$0xff]
  %v9 = vld [vmem:[%s0 + $0x8] sm:$0xff]
  %10 = vst [vmem:[%s1] sm:$0xff] %v8
  %11 = vst [vmem:[%s1 + $0x8] sm:$0xff] %v9
  // Predicated region
  $region6: #{mymodel_forward.1} parent=0 // pred_check
    _
  $region7: #{mymodel_forward.1} parent=0 // pred_check_branch
    %13 = sbr.rel (0) target = $region9
  $region8: #{mymodel_forward.1} parent=0 // pred_region
    _
  $region9: #{mymodel_forward.1} parent=0 // pred_fallthru
    _
  // Predicated region
  $region10: #{mymodel_forward.1} parent=0 // pred_check
    _
  $region11: #{mymodel_forward.1} parent=0 // pred_check_branch
    %15 = sbr.rel (0) target = $region13
  $region12: #{mymodel_forward.1} parent=0 // pred_region
    _
  $region13: #{mymodel_forward.1} parent=0 // pred_fallthru
    _

</llo_original>
